<compile_context>
chip_gen: v7x
topology: tpu7x:2x2x1
jax: 0.10.0
libtpu: 0.0.40
codegen_flags: <defaults>
</compile_context>

<pallas_src>
import jax
import jax.numpy as jnp
from jax.experimental import pallas as pl
from jax.experimental.pallas import tpu as pltpu


def _round_up(v, m):
    return (v + m - 1) // m * m


# --------------------------------------------------------------------------
# Per-generation configuration
# --------------------------------------------------------------------------
def _chip_vmem_capacity_bytes():
    """Best-effort physical VMEM capacity per TensorCore."""
    try:
        info = pltpu.get_tpu_info()
        for attr in ("vmem_capacity_bytes", "vmem_size_bytes", "vmem_bytes"):
            v = getattr(info, attr, None)
            if isinstance(v, int) and v > 0:
                return v
    except Exception:
        pass
    try:
        kind = jax.devices()[0].device_kind.lower()
        if "v7" in kind or "7x" in kind:
            return 64 * 1024 * 1024
        return 128 * 1024 * 1024
    except Exception:
        return 64 * 1024 * 1024  # conservative


def _default_tiles():
    """Returns (tm, tn, vmem_limit_bytes) for this chip generation."""
    cap = _chip_vmem_capacity_bytes()
    if cap <= 64 * 1024 * 1024:
        # v7x-class: 64 MiB / TC.  Narrow d_inner tile, decent token tile,
        # and never budget the full physical VMEM (compiler scratch headroom).
        return 384, 256, min(cap - 8 * 1024 * 1024, 56 * 1024 * 1024)
    # v5e / v6e-class: 128 MiB.  Big token tile -- weight-streaming arithmetic
    # intensity scales with tm, so this is the lever that gets past the HBM
    # ridge -- and a raised scoped-VMEM budget.
    return 512, 512, 100 * 1024 * 1024


# --------------------------------------------------------------------------
# Kernel bodies
# --------------------------------------------------------------------------
def _swiglu_kernel_f32_out(x_ref, w13_ref, b13_ref, w2_ref, b2_ref, o_ref):
    """f32 output: accumulate directly into the resident output block."""
    j = pl.program_id(1)
    tn = w2_ref.shape[0]

    # One fused matmul for both branches: h = x @ [W1_j | W3_j] + [b1_j | b3_j]
    h = jnp.dot(x_ref[...], w13_ref[...],
                preferred_element_type=jnp.float32) + b13_ref[...]
    h1 = h[:, :tn]          # gate   (lane-aligned static slice, free)
    h3 = h[:, tn:]          # value
    gated = (h1 * jax.nn.sigmoid(h1)) * h3                      # f32 on VPU/EUP

    partial = jnp.dot(gated.astype(w2_ref.dtype), w2_ref[...],
                      preferred_element_type=jnp.float32)

    @pl.when(j == 0)
    def _():
        o_ref[...] = partial + b2_ref[...]      # bias added exactly once

    @pl.when(j != 0)
    def _():
        o_ref[...] += partial


def _swiglu_kernel_acc(x_ref, w13_ref, b13_ref, w2_ref, b2_ref, o_ref, acc_ref):
    """Non-f32 output: f32 VMEM accumulator, cast once at the last step."""
    j = pl.program_id(1)
    tn = w2_ref.shape[0]

    h = jnp.dot(x_ref[...], w13_ref[...],
                preferred_element_type=jnp.float32) + b13_ref[...]
    h1 = h[:, :tn]
    h3 = h[:, tn:]
    gated = (h1 * jax.nn.sigmoid(h1)) * h3

    partial = jnp.dot(gated.astype(w2_ref.dtype), w2_ref[...],
                      preferred_element_type=jnp.float32)

    @pl.when(j == 0)
    def _():
        acc_ref[...] = jnp.zeros_like(acc_ref)

    acc_ref[...] += partial

    @pl.when(j == pl.num_programs(1) - 1)
    def _():
        o_ref[...] = (acc_ref[...] + b2_ref[...]).astype(o_ref.dtype)


# --------------------------------------------------------------------------
# One-time parameter preparation (transpose / pad / fuse / cast, not per call)
# --------------------------------------------------------------------------
def prepare_swiglu_params(w1, b1, w2, b2, w3, b3, *, param_dtype=None, tn=None):
    """wN are PyTorch-convention (out, in); bN are (out,).

    Returns a dict of lane-dense, [in, out]-layout parameters with W1/W3 fused
    per d_inner tile, plus metadata.  `param_dtype=jnp.bfloat16` enables bf16
    MXU matmuls (f32 accumulation); activations are cast in the wrapper.
    """
    d_inner, d_model = w1.shape
    d_model_out = w2.shape[0]
    if param_dtype is None:
        param_dtype = w1.dtype
    if tn is None:
        tn = _default_tiles()[1]

    # d_inner tile: multiple of 128 lanes, no larger than padded d_inner.
    tn = max(128, min(_round_up(tn, 128), _round_up(d_inner, 128)))
    dm_p = _round_up(d_model, 128)
    di_p = _round_up(d_inner, tn)
    do_p = _round_up(d_model_out, 128)
    nb = di_p // tn

    def pad2(a, rows, cols):
        return jnp.pad(a, ((0, rows - a.shape[0]), (0, cols - a.shape[1])))

    # [in, out] layout, lane-dense padding, optional bf16 cast.
    w1t = pad2(jnp.asarray(w1).T, dm_p, di_p).astype(param_dtype)
    w3t = pad2(jnp.asarray(w3).T, dm_p, di_p).astype(param_dtype)
    # Fuse so that inner step j streams [W1 block j | W3 block j] contiguously.
    w13 = jnp.stack(
        [w1t.reshape(dm_p, nb, tn), w3t.reshape(dm_p, nb, tn)], axis=2
    ).reshape(dm_p, nb * 2 * tn)

    b1p = jnp.pad(jnp.asarray(b1, jnp.float32), (0, di_p - d_inner))
    b3p = jnp.pad(jnp.asarray(b3, jnp.float32), (0, di_p - d_inner))
    b13 = jnp.stack([b1p.reshape(nb, tn), b3p.reshape(nb, tn)],
                    axis=1).reshape(1, nb * 2 * tn)

    return dict(
        w13=w13,
        b13=b13,
        w2=pad2(jnp.asarray(w2).T, di_p, do_p).astype(param_dtype),
        b2=jnp.pad(jnp.asarray(b2, jnp.float32),
                   (0, do_p - d_model_out)).reshape(1, do_p),
        d_model=d_model, d_inner=d_inner, d_model_out=d_model_out,
        tn=tn, param_dtype=param_dtype,
    )


# --------------------------------------------------------------------------
# Wrapper
# --------------------------------------------------------------------------
def swiglu_ffn(x, params, *, tm=None, vmem_limit_bytes=None,
               single_buffer_x=True):
    """x: (..., d_model).  params: output of prepare_swiglu_params."""
    d_model = params["d_model"]
    d_model_out = params["d_model_out"]
    w13, b13, w2, b2 = params["w13"], params["b13"], params["w2"], params["b2"]
    tn = params["tn"]
    param_dtype = params["param_dtype"]

    dm_p = w13.shape[0]
    di_p, do_p = w2.shape
    nb = di_p // tn

    d_tm, _, d_vmem = _default_tiles()
    if tm is None:
        tm = d_tm
    if vmem_limit_bytes is None:
        vmem_limit_bytes = d_vmem

    lead_shape = x.shape[:-1]
    out_dtype = x.dtype
    x2 = x.reshape(-1, d_model)
    m = x2.shape[0]

    # Token tile: multiple of 8 sublanes, clamped for small inputs.
    tm = max(8, min(tm, _round_up(m, 8)))
    m_pad = _round_up(m, tm)

    # Cast activations to the weight dtype once here (bf16 path: halves x HBM
    # traffic and the x VMEM buffer; removes the per-step cast in the kernel).
    x2 = x2.astype(param_dtype)
    # Only materialize a padded copy of x when padding is actually required.
    if m_pad != m or dm_p != d_model:
        x2 = jnp.pad(x2, ((0, m_pad - m), (0, dm_p - d_model)))

    grid = (m_pad // tm, nb)

    f32_out = (out_dtype == jnp.float32)
    kernel = _swiglu_kernel_f32_out if f32_out else _swiglu_kernel_acc
    scratch = [] if f32_out else [pltpu.VMEM((tm, do_p), jnp.float32)]

    def build(use_single_buffer_x):
        if use_single_buffer_x:
            # x's block index (i, 0) is constant across the inner j axis:
            # double-buffering it only wastes VMEM.  Its single exposed DMA per
            # token tile amortizes over the nb inner steps.
            x_spec = pl.BlockSpec((tm, dm_p), lambda i, j: (i, 0),
                                  pipeline_mode=pl.Buffered(1))
        else:
            x_spec = pl.BlockSpec((tm, dm_p), lambda i, j: (i, 0))
        return pl.pallas_call(
            kernel,
            out_shape=jax.ShapeDtypeStruct((m_pad, do_p), out_dtype),
            grid_spec=pltpu.PrefetchScalarGridSpec(
                num_scalar_prefetch=0,
                grid=grid,
                in_specs=[
                    x_spec,                                            # x tile
                    pl.BlockSpec((dm_p, 2 * tn), lambda i, j: (0, j)),  # [W1|W3]
                    pl.BlockSpec((1, 2 * tn), lambda i, j: (0, j)),     # [b1|b3]
                    pl.BlockSpec((tn, do_p), lambda i, j: (j, 0)),      # W2
                    pl.BlockSpec((1, do_p), lambda i, j: (0, 0)),       # b2
                ],
                out_specs=pl.BlockSpec((tm, do_p), lambda i, j: (i, 0)),
                scratch_shapes=scratch,
            ),
            compiler_params=pltpu.CompilerParams(
                dimension_semantics=("parallel", "arbitrary"),
                vmem_limit_bytes=vmem_limit_bytes,
            ),
        )

    if single_buffer_x:
        try:
            out = build(True)(x2, w13, b13, w2, b2)
        except Exception:
            # Installed JAX rejected Buffered(1): fall back to default buffering.
            out = build(False)(x2, w13, b13, w2, b2)
    else:
        out = build(False)(x2, w13, b13, w2, b2)

    return out[:m, :d_model_out].reshape(*lead_shape, d_model_out)


# --------------------------------------------------------------------------
# Reference + demo
# --------------------------------------------------------------------------
def _init_linear(key, out_dim, in_dim, dtype=jnp.float32):
    """nn.Linear-style init: U(-1/sqrt(in), 1/sqrt(in))."""
    kw, kb = jax.random.split(key)
    bound = 1.0 / (in_dim ** 0.5)
    w = jax.random.uniform(kw, (out_dim, in_dim), dtype, -bound, bound)
    b = jax.random.uniform(kb, (out_dim,), dtype, -bound, bound)
    return w, b


def _reference(x, w1, b1, w2, b2, w3, b3):
    h1 = x @ w1.T + b1
    h3 = x @ w3.T + b3
    g = h1 * jax.nn.sigmoid(h1) * h3
    return g @ w2.T + b2


if __name__ == "__main__":
    # FeedForwardConfig: d_model=32, d_inner=64, d_model_out=32
    batch, seq = 2, 8
    d_model, d_inner, d_model_out = 32, 64, 32

    key = jax.random.PRNGKey(0)
    kx, k1, k2, k3 = jax.random.split(key, 4)

    x = jax.random.normal(kx, (batch, seq, d_model), jnp.float32)
    w1, b1 = _init_linear(k1, d_inner, d_model)
    w2, b2 = _init_linear(k2, d_model_out, d_inner)
    w3, b3 = _init_linear(k3, d_inner, d_model)

    y_ref = _reference(x, w1, b1, w2, b2, w3, b3)

    # f32 weights + f32 activations (accumulate-into-output path): exact check.
    params_f32 = prepare_swiglu_params(w1, b1, w2, b2, w3, b3)
    y = jax.block_until_ready(swiglu_ffn(x, params_f32))
    assert y.shape == (batch, seq, d_model_out)
    assert jnp.allclose(y, y_ref, atol=1e-5, rtol=1e-5), "f32 mismatch vs reference"

    # bf16 weights + wrapper-side bf16 activation cast: loose sanity check.
    params_bf16 = prepare_swiglu_params(w1, b1, w2, b2, w3, b3,
                                        param_dtype=jnp.bfloat16)
    y_bf16 = jax.block_until_ready(swiglu_ffn(x, params_bf16))
    assert y_bf16.shape == (batch, seq, d_model_out)
    assert float(jnp.max(jnp.abs(y_bf16 - y_ref))) < 0.25, "bf16 path diverged"

    # bf16 output dtype exercises the scratch-accumulator finalize path.
    y_bf16_out = jax.block_until_ready(
        swiglu_ffn(x.astype(jnp.bfloat16), params_bf16))
    assert y_bf16_out.shape == (batch, seq, d_model_out)
    assert y_bf16_out.dtype == jnp.bfloat16
    assert float(jnp.max(jnp.abs(y_bf16_out.astype(jnp.float32) - y_ref))) < 0.25

    print("KERNEL_OK")
</pallas_src>

<mosaic_0001>
module attributes {stable_mosaic.version = 11 : i64} {
  func.func @_swiglu_kernel_f32_out(%arg0: i32, %arg1: i32, %arg2: memref<16x128xf32, #tpu.memory_space<vmem>>, %arg3: memref<128x256xf32, #tpu.memory_space<vmem>>, %arg4: memref<1x256xf32, #tpu.memory_space<vmem>>, %arg5: memref<128x128xf32, #tpu.memory_space<vmem>>, %arg6: memref<1x128xf32, #tpu.memory_space<vmem>>, %arg7: memref<16x128xf32, #tpu.memory_space<vmem>>) attributes {dimension_semantics = [#tpu.dimension_semantics<parallel>, #tpu.dimension_semantics<arbitrary>], iteration_bounds = array<i64: 1, 1>, scalar_prefetch = 0 : i64, scratch_operands = 0 : i64, tpu.core_type = #tpu.core_type<tc>, window_params = [{pipeline_mode = #tpu.pipeline_mode<synchronous>, transform_indices = @transform_0, window_bounds = array<i64: 16, 128>}, {transform_indices = @transform_1, window_bounds = array<i64: 128, 256>}, {transform_indices = @transform_2, window_bounds = array<i64: 1, 256>}, {transform_indices = @transform_3, window_bounds = array<i64: 128, 128>}, {pipeline_mode = #tpu.pipeline_mode<synchronous>, transform_indices = @transform_4, window_bounds = array<i64: 1, 128>}, {transform_indices = @transform_5, window_bounds = array<i64: 16, 128>}]} {
    %c0 = arith.constant 0 : index
    %c0_0 = arith.constant 0 : index
    %0 = vector.load %arg2[%c0, %c0_0] : memref<16x128xf32, #tpu.memory_space<vmem>>, vector<16x128xf32>
    %c0_1 = arith.constant 0 : index
    %c0_2 = arith.constant 0 : index
    %1 = vector.load %arg3[%c0_1, %c0_2] : memref<128x256xf32, #tpu.memory_space<vmem>>, vector<128x256xf32>
    %cst = arith.constant dense<0.000000e+00> : vector<16x256xf32>
    %2 = tpu.matmul %0, %1, %cst {dimension_numbers = #tpu.dot_dimension_numbers<[1], [0], [0], [1], [0, 0, 1, 1], [], []>} : vector<16x128xf32>, vector<128x256xf32>, vector<16x256xf32> -> vector<16x256xf32>
    %c0_3 = arith.constant 0 : index
    %c0_4 = arith.constant 0 : index
    %3 = vector.load %arg4[%c0_3, %c0_4] : memref<1x256xf32, #tpu.memory_space<vmem>>, vector<1x256xf32>
    %4 = vector.broadcast %3 : vector<1x256xf32> to vector<16x256xf32>
    %5 = arith.addf %2, %4 : vector<16x256xf32>
    %6 = vector.extract_strided_slice %5 {offsets = [0, 0], sizes = [16, 128], strides = [1, 1]} : vector<16x256xf32> to vector<16x128xf32>
    %7 = vector.extract_strided_slice %5 {offsets = [0, 128], sizes = [16, 128], strides = [1, 1]} : vector<16x256xf32> to vector<16x128xf32>
    %8 = arith.negf %6 : vector<16x128xf32>
    %9 = math.exp %8 : vector<16x128xf32>
    %cst_5 = arith.constant 1.000000e+00 : f32
    %10 = vector.broadcast %cst_5 : f32 to vector<16x128xf32>
    %11 = arith.addf %10, %9 : vector<16x128xf32>
    %12 = arith.divf %10, %11 : vector<16x128xf32>
    %13 = arith.mulf %6, %12 : vector<16x128xf32>
    %14 = arith.mulf %13, %7 : vector<16x128xf32>
    %c0_6 = arith.constant 0 : index
    %c0_7 = arith.constant 0 : index
    %15 = vector.load %arg5[%c0_6, %c0_7] : memref<128x128xf32, #tpu.memory_space<vmem>>, vector<128x128xf32>
    %cst_8 = arith.constant dense<0.000000e+00> : vector<16x128xf32>
    %16 = tpu.matmul %14, %15, %cst_8 {dimension_numbers = #tpu.dot_dimension_numbers<[1], [0], [0], [1], [0, 0, 1, 1], [], []>} : vector<16x128xf32>, vector<128x128xf32>, vector<16x128xf32> -> vector<16x128xf32>
    %c0_i32 = arith.constant 0 : i32
    %17 = arith.cmpi eq, %arg1, %c0_i32 : i32
    %18 = arith.extui %17 : i1 to i32
    %c0_i32_9 = arith.constant 0 : i32
    %19 = arith.cmpi ne, %18, %c0_i32_9 : i32
    scf.if %19 {
      %c0_12 = arith.constant 0 : index
      %c0_13 = arith.constant 0 : index
      %23 = vector.load %arg6[%c0_12, %c0_13] : memref<1x128xf32, #tpu.memory_space<vmem>>, vector<1x128xf32>
      %24 = vector.broadcast %23 : vector<1x128xf32> to vector<16x128xf32>
      %25 = arith.addf %16, %24 : vector<16x128xf32>
      %c0_14 = arith.constant 0 : index
      %c0_15 = arith.constant 0 : index
      %26 = vector.load %arg7[%c0_14, %c0_15] : memref<16x128xf32, #tpu.memory_space<vmem>>, vector<16x128xf32>
      tpu.vector_store %arg7[%c0_14, %c0_15], %25 {strides = array<i32>} : memref<16x128xf32, #tpu.memory_space<vmem>>, vector<16x128xf32>,
    } else {
    }
    %c0_i32_10 = arith.constant 0 : i32
    %20 = arith.cmpi ne, %arg1, %c0_i32_10 : i32
    %21 = arith.extui %20 : i1 to i32
    %c0_i32_11 = arith.constant 0 : i32
    %22 = arith.cmpi ne, %21, %c0_i32_11 : i32
    scf.if %22 {
      %c0_12 = arith.constant 0 : index
      %c0_13 = arith.constant 0 : index
      %23 = vector.load %arg7[%c0_12, %c0_13] : memref<16x128xf32, #tpu.memory_space<vmem>>, vector<16x128xf32>
      %24 = arith.addf %23, %16 : vector<16x128xf32>
      %c0_14 = arith.constant 0 : index
      %c0_15 = arith.constant 0 : index
      %25 = vector.load %arg7[%c0_14, %c0_15] : memref<16x128xf32, #tpu.memory_space<vmem>>, vector<16x128xf32>
      tpu.vector_store %arg7[%c0_14, %c0_15], %24 {strides = array<i32>} : memref<16x128xf32, #tpu.memory_space<vmem>>, vector<16x128xf32>,
    } else {
    }
    return
  }
  func.func @transform_0(%arg0: i32, %arg1: i32) -> (i32, i32) {
    %c0_i32 = arith.constant 0 : i32
    %c0_i32_0 = arith.constant 0 : i32
    return %arg0, %c0_i32 : i32, i32
  }
  func.func @transform_1(%arg0: i32, %arg1: i32) -> (i32, i32) {
    %c0_i32 = arith.constant 0 : i32
    %c0_i32_0 = arith.constant 0 : i32
    return %c0_i32, %arg1 : i32, i32
  }
  func.func @transform_2(%arg0: i32, %arg1: i32) -> (i32, i32) {
    %c0_i32 = arith.constant 0 : i32
    %c0_i32_0 = arith.constant 0 : i32
    return %c0_i32, %arg1 : i32, i32
  }
  func.func @transform_3(%arg0: i32, %arg1: i32) -> (i32, i32) {
    %c0_i32 = arith.constant 0 : i32
    %c0_i32_0 = arith.constant 0 : i32
    return %arg1, %c0_i32 : i32, i32
  }
  func.func @transform_4(%arg0: i32, %arg1: i32) -> (i32, i32) {
    %c0_i32 = arith.constant 0 : i32
    %c0_i32_0 = arith.constant 0 : i32
    %c0_i32_1 = arith.constant 0 : i32
    return %c0_i32, %c0_i32_0 : i32, i32
  }
  func.func @transform_5(%arg0: i32, %arg1: i32) -> (i32, i32) {
    %c0_i32 = arith.constant 0 : i32
    %c0_i32_0 = arith.constant 0 : i32
    return %arg0, %c0_i32 : i32, i32
  }
}

module attributes {stable_mosaic.version = 11 : i64} {
  func.func @_swiglu_kernel_f32_out(%arg0: i32, %arg1: i32, %arg2: memref<16x128xf32, #tpu.memory_space<vmem>>, %arg3: memref<128x256xf32, #tpu.memory_space<vmem>>, %arg4: memref<1x256xf32, #tpu.memory_space<vmem>>, %arg5: memref<128x128xf32, #tpu.memory_space<vmem>>, %arg6: memref<1x128xf32, #tpu.memory_space<vmem>>, %arg7: memref<16x128xf32, #tpu.memory_space<vmem>>) attributes {dimension_semantics = [#tpu.dimension_semantics<parallel>, #tpu.dimension_semantics<arbitrary>], iteration_bounds = array<i64: 1, 1>, scalar_prefetch = 0 : i64, scratch_operands = 0 : i64, tpu.core_type = #tpu.core_type<tc>, window_params = [{transform_indices = @transform_0, window_bounds = array<i64: 16, 128>}, {transform_indices = @transform_1, window_bounds = array<i64: 128, 256>}, {transform_indices = @transform_2, window_bounds = array<i64: 1, 256>}, {transform_indices = @transform_3, window_bounds = array<i64: 128, 128>}, {pipeline_mode = #tpu.pipeline_mode<synchronous>, transform_indices = @transform_4, window_bounds = array<i64: 1, 128>}, {transform_indices = @transform_5, window_bounds = array<i64: 16, 128>}]} {
    %c0 = arith.constant 0 : index
    %c0_0 = arith.constant 0 : index
    %0 = vector.load %arg2[%c0, %c0_0] : memref<16x128xf32, #tpu.memory_space<vmem>>, vector<16x128xf32>
    %c0_1 = arith.constant 0 : index
    %c0_2 = arith.constant 0 : index
    %1 = vector.load %arg3[%c0_1, %c0_2] : memref<128x256xf32, #tpu.memory_space<vmem>>, vector<128x256xf32>
    %cst = arith.constant dense<0.000000e+00> : vector<16x256xf32>
    %2 = tpu.matmul %0, %1, %cst {dimension_numbers = #tpu.dot_dimension_numbers<[1], [0], [0], [1], [0, 0, 1, 1], [], []>} : vector<16x128xf32>, vector<128x256xf32>, vector<16x256xf32> -> vector<16x256xf32>
    %c0_3 = arith.constant 0 : index
    %c0_4 = arith.constant 0 : index
    %3 = vector.load %arg4[%c0_3, %c0_4] : memref<1x256xf32, #tpu.memory_space<vmem>>, vector<1x256xf32>
    %4 = vector.broadcast %3 : vector<1x256xf32> to vector<16x256xf32>
    %5 = arith.addf %2, %4 : vector<16x256xf32>
    %6 = vector.extract_strided_slice %5 {offsets = [0, 0], sizes = [16, 128], strides = [1, 1]} : vector<16x256xf32> to vector<16x128xf32>
    %7 = vector.extract_strided_slice %5 {offsets = [0, 128], sizes = [16, 128], strides = [1, 1]} : vector<16x256xf32> to vector<16x128xf32>
    %8 = arith.negf %6 : vector<16x128xf32>
    %9 = math.exp %8 : vector<16x128xf32>
    %cst_5 = arith.constant 1.000000e+00 : f32
    %10 = vector.broadcast %cst_5 : f32 to vector<16x128xf32>
    %11 = arith.addf %10, %9 : vector<16x128xf32>
    %12 = arith.divf %10, %11 : vector<16x128xf32>
    %13 = arith.mulf %6, %12 : vector<16x128xf32>
    %14 = arith.mulf %13, %7 : vector<16x128xf32>
    %c0_6 = arith.constant 0 : index
    %c0_7 = arith.constant 0 : index
    %15 = vector.load %arg5[%c0_6, %c0_7] : memref<128x128xf32, #tpu.memory_space<vmem>>, vector<128x128xf32>
    %cst_8 = arith.constant dense<0.000000e+00> : vector<16x128xf32>
    %16 = tpu.matmul %14, %15, %cst_8 {dimension_numbers = #tpu.dot_dimension_numbers<[1], [0], [0], [1], [0, 0, 1, 1], [], []>} : vector<16x128xf32>, vector<128x128xf32>, vector<16x128xf32> -> vector<16x128xf32>
    %c0_i32 = arith.constant 0 : i32
    %17 = arith.cmpi eq, %arg1, %c0_i32 : i32
    %18 = arith.extui %17 : i1 to i32
    %c0_i32_9 = arith.constant 0 : i32
    %19 = arith.cmpi ne, %18, %c0_i32_9 : i32
    scf.if %19 {
      %c0_12 = arith.constant 0 : index
      %c0_13 = arith.constant 0 : index
      %23 = vector.load %arg6[%c0_12, %c0_13] : memref<1x128xf32, #tpu.memory_space<vmem>>, vector<1x128xf32>
      %24 = vector.broadcast %23 : vector<1x128xf32> to vector<16x128xf32>
      %25 = arith.addf %16, %24 : vector<16x128xf32>
      %c0_14 = arith.constant 0 : index
      %c0_15 = arith.constant 0 : index
      %26 = vector.load %arg7[%c0_14, %c0_15] : memref<16x128xf32, #tpu.memory_space<vmem>>, vector<16x128xf32>
      tpu.vector_store %arg7[%c0_14, %c0_15], %25 {strides = array<i32>} : memref<16x128xf32, #tpu.memory_space<vmem>>, vector<16x128xf32>,
    } else {
    }
    %c0_i32_10 = arith.constant 0 : i32
    %20 = arith.cmpi ne, %arg1, %c0_i32_10 : i32
    %21 = arith.extui %20 : i1 to i32
    %c0_i32_11 = arith.constant 0 : i32
    %22 = arith.cmpi ne, %21, %c0_i32_11 : i32
    scf.if %22 {
      %c0_12 = arith.constant 0 : index
      %c0_13 = arith.constant 0 : index
      %23 = vector.load %arg7[%c0_12, %c0_13] : memref<16x128xf32, #tpu.memory_space<vmem>>, vector<16x128xf32>
      %24 = arith.addf %23, %16 : vector<16x128xf32>
      %c0_14 = arith.constant 0 : index
      %c0_15 = arith.constant 0 : index
      %25 = vector.load %arg7[%c0_14, %c0_15] : memref<16x128xf32, #tpu.memory_space<vmem>>, vector<16x128xf32>
      tpu.vector_store %arg7[%c0_14, %c0_15], %24 {strides = array<i32>} : memref<16x128xf32, #tpu.memory_space<vmem>>, vector<16x128xf32>,
    } else {
    }
    return
  }
  func.func @transform_0(%arg0: i32, %arg1: i32) -> (i32, i32) {
    %c0_i32 = arith.constant 0 : i32
    %c0_i32_0 = arith.constant 0 : i32
    return %arg0, %c0_i32 : i32, i32
  }
  func.func @transform_1(%arg0: i32, %arg1: i32) -> (i32, i32) {
    %c0_i32 = arith.constant 0 : i32
    %c0_i32_0 = arith.constant 0 : i32
    return %c0_i32, %arg1 : i32, i32
  }
  func.func @transform_2(%arg0: i32, %arg1: i32) -> (i32, i32) {
    %c0_i32 = arith.constant 0 : i32
    %c0_i32_0 = arith.constant 0 : i32
    return %c0_i32, %arg1 : i32, i32
  }
  func.func @transform_3(%arg0: i32, %arg1: i32) -> (i32, i32) {
    %c0_i32 = arith.constant 0 : i32
    %c0_i32_0 = arith.constant 0 : i32
    return %arg1, %c0_i32 : i32, i32
  }
  func.func @transform_4(%arg0: i32, %arg1: i32) -> (i32, i32) {
    %c0_i32 = arith.constant 0 : i32
    %c0_i32_0 = arith.constant 0 : i32
    %c0_i32_1 = arith.constant 0 : i32
    return %c0_i32, %c0_i32_0 : i32, i32
  }
  func.func @transform_5(%arg0: i32, %arg1: i32) -> (i32, i32) {
    %c0_i32 = arith.constant 0 : i32
    %c0_i32_0 = arith.constant 0 : i32
    return %arg0, %c0_i32 : i32, i32
  }
}

</mosaic_0001>

<llo_original>
// kernel: tpu_custom_call.1
$region0: #{tpu_custom_call.1}
  #allocation0 [shape = 'u32[]', space=smem, size = 0x4, offset = 0x4, fixed_abs, tag = 'smem constant byte address 0x4 - core index']
  #allocation1 [shape = 'u32[144,128]{1,0:T(1,128)}', space=vmem, size = 0x12000, scoped, tag = 'internal scratch']
  %s0 = inlined_call_operand.hbm [shape: f32[16,128], index: 0, kind: input, shape index: {}]
  %s1 = inlined_call_operand.hbm [shape: f32[128,256], index: 1, kind: input, shape index: {}]
  %s2 = inlined_call_operand.hbm [shape: f32[1,256], index: 2, kind: input, shape index: {}]
  %s3 = inlined_call_operand.hbm [shape: f32[128,128], index: 3, kind: input, shape index: {}]
  %s4 = inlined_call_operand.hbm [shape: f32[1,128], index: 4, kind: input, shape index: {}]
  %s5 = inlined_call_operand.hbm [shape: f32[16,128], index: 5, kind: output, shape index: {}]
  %s6 = sld [smem:[#allocation0]]
  $region58: #{tpu_custom_call.1} parent=0
    _
  %s8 = ssub.s32 1, %s6
  %s9 = scalar_select 0, %s8, %s6
  $region1: #{tpu_custom_call.1} parent=0
    #allocation2 [shape = 'u8[8192]{0}', space=vmem, size = 0x2000, scoped, tag = 'input window, operand 0, single buffered']
    #allocation3 [shape = 's32[1]{0}', space=sflag, size = 0x4, scoped, tag = 'scoped memory for tpu_custom_call.1']
    #allocation4 [shape = 's32[1]{0}', space=sflag, size = 0x4, scoped, tag = 'scoped memory for tpu_custom_call.1']
    #allocation5 [shape = 'u8[131072]{0}', space=vmem, size = 0x20000, scoped, tag = 'input window, operand 1, single buffered']
    #allocation6 [shape = 's32[1]{0}', space=sflag, size = 0x4, scoped, tag = 'scoped memory for tpu_custom_call.1']
    #allocation7 [shape = 'u8[1024]{0}', space=vmem, size = 0x400, scoped, tag = 'input window, operand 2, single buffered']
    #allocation8 [shape = 'u8[65536]{0}', space=vmem, size = 0x10000, scoped, tag = 'input window, operand 3, single buffered']
    #allocation9 [shape = 's32[1]{0}', space=sflag, size = 0x4, scoped, tag = 'scoped memory for tpu_custom_call.1']
    #allocation10 [shape = 'u8[512]{0}', space=vmem, size = 0x400, scoped, tag = 'input window, operand 4, single buffered']
    #allocation11 [shape = 'u8[8192]{0}', space=vmem, size = 0x2000, scoped, tag = 'output window, operand 0, single buffered']
    %10 = vsyncpa [#allocation3], 0
    %11 = vsyncpa [#allocation6], 0
    %12 = vsyncpa [#allocation9], 0
    %13 = vsyncpa [#allocation4], 0
    // Predicated region
    $region2: #{tpu_custom_call.1} parent=1 // pred_check
      _
    $region3: #{tpu_custom_call.1} parent=1 // pred_check_branch
      %15 = sbr.rel (0) target = $region5
    $region4: #{tpu_custom_call.1} parent=1 // pred_region
      %s17 = ssub.s32 256, 256
      %18 = vsyncadd [#allocation3], %s17
      %s19 = sshll.u32 [#allocation2], 4
      %s20 = int_to_ptr.vmem [resolvable:$true] %s19
      %25 = dma.hbm_to_vmem [thread:$0]  %s0, 256, %s20, [#allocation3], 128, 128, 8
    $region5: #{tpu_custom_call.1} parent=1 // pred_fallthru
      _
    // Predicated region
    $region6: #{tpu_custom_call.1} parent=1 // pred_check
      _
    $region7: #{tpu_custom_call.1} parent=1 // pred_check_branch
      %27 = sbr.rel (0) target = $region9
    $region8: #{tpu_custom_call.1} parent=1 // pred_region
      %s29 = ssub.s32 4096, 4096
      %30 = vsyncadd [#allocation6], %s29
      %s31 = sshll.u32 [#allocation5], 4
      %s32 = int_to_ptr.vmem [resolvable:$true] %s31
      %37 = dma.hbm_to_vmem [thread:$0]  %s1, 4096, %s32, [#allocation6], 256, 256, 16
    $region9: #{tpu_custom_call.1} parent=1 // pred_fallthru
      _
    // Predicated region
    $region10: #{tpu_custom_call.1} parent=1 // pred_check
      _
    $region11: #{tpu_custom_call.1} parent=1 // pred_check_branch
      %39 = sbr.rel (0) target = $region13
    $region12: #{tpu_custom_call.1} parent=1 // pred_region
      %s41 = ssub.s32 32, 32
      %42 = vsyncadd [#allocation6], %s41
      %s44 = sshll.u32 [#allocation7], 4
      %s45 = int_to_ptr.vmem [resolvable:$true] %s44
      %47 = dma.hbm_to_vmem [thread:$0]  %s2, 32, %s45, [#allocation6]
    $region13: #{tpu_custom_call.1} parent=1 // pred_fallthru
      _
    // Predicated region
    $region14: #{tpu_custom_call.1} parent=1 // pred_check
      _
    $region15: #{tpu_custom_call.1} parent=1 // pred_check_branch
      %49 = sbr.rel (0) target = $region17
    $region16: #{tpu_custom_call.1} parent=1 // pred_region
      %s51 = ssub.s32 2048, 2048
      %52 = vsyncadd [#allocation9], %s51
      %s53 = sshll.u32 [#allocation8], 4
      %s54 = int_to_ptr.vmem [resolvable:$true] %s53
      %59 = dma.hbm_to_vmem [thread:$0]  %s3, 2048, %s54, [#allocation9], 128, 128, 8
    $region17: #{tpu_custom_call.1} parent=1 // pred_fallthru
      _
    // Predicated region
    $region18: #{tpu_custom_call.1} parent=1 // pred_check
      _
    $region19: #{tpu_custom_call.1} parent=1 // pred_check_branch
      %61 = sbr.rel (0) target = $region21
    $region20: #{tpu_custom_call.1} parent=1 // pred_region
      %s63 = ssub.s32 16, 16
      %64 = vsyncadd [#allocation9], %s63
      %s66 = sshll.u32 [#allocation10], 4
      %s67 = int_to_ptr.vmem [resolvable:$true] %s66
      %69 = dma.hbm_to_vmem [thread:$0]  %s4, 16, %s67, [#allocation9]
    $region21: #{tpu_custom_call.1} parent=1 // pred_fallthru
      _
    // Predicated region
    $region22: #{tpu_custom_call.1} parent=1 // pred_check
      _
    $region23: #{tpu_custom_call.1} parent=1 // pred_check_branch
      %71 = sbr.rel (0) target = $region25
    $region24: #{tpu_custom_call.1} parent=1 // pred_region
      %72 = dma.done [#allocation3], 256
    $region25: #{tpu_custom_call.1} parent=1 // pred_fallthru
      _
    // Predicated region
    $region26: #{tpu_custom_call.1} parent=1 // pred_check
      _
    $region27: #{tpu_custom_call.1} parent=1 // pred_check_branch
      %74 = sbr.rel (0) target = $region29
    $region28: #{tpu_custom_call.1} parent=1 // pred_region
      %75 = dma.done [#allocation6], 4096
    $region29: #{tpu_custom_call.1} parent=1 // pred_fallthru
      _
    // Predicated region
    $region30: #{tpu_custom_call.1} parent=1 // pred_check
      _
    $region31: #{tpu_custom_call.1} parent=1 // pred_check_branch
      %77 = sbr.rel (0) target = $region33
    $region32: #{tpu_custom_call.1} parent=1 // pred_region
      %78 = dma.done [#allocation6], 32
    $region33: #{tpu_custom_call.1} parent=1 // pred_fallthru
      _
    // Predicated region
    $region34: #{tpu_custom_call.1} parent=1 // pred_check
      _
    $region35: #{tpu_custom_call.1} parent=1 // pred_check_branch
      %80 = sbr.rel (0) target = $region37
    $region36: #{tpu_custom_call.1} parent=1 // pred_region
      %81 = dma.done [#allocation9], 2048
    $region37: #{tpu_custom_call.1} parent=1 // pred_fallthru
      _
    // Predicated region
    $region38: #{tpu_custom_call.1} parent=1 // pred_check
      _
    $region39: #{tpu_custom_call.1} parent=1 // pred_check_branch
      %83 = sbr.rel (0) target = $region41
    $region40: #{tpu_custom_call.1} parent=1 // pred_region
      %84 = dma.done [#allocation9], 16
    $region41: #{tpu_custom_call.1} parent=1 // pred_fallthru
      _
    %v85 = vld [vmem:[#allocation2] sm:$0xff]
    %v86 = vld [vmem:[#allocation2 + $0x8] sm:$0xff]
    %v87 = vld [vmem:[#allocation5] sm:$0xff]
    %v88 = vld [vmem:[#allocation5 + $0x8] sm:$0xff]
    %v89 = vld [vmem:[#allocation5 + $0x10] sm:$0xff]
    %v90 = vld [vmem:[#allocation5 + $0x18] sm:$0xff]
    %v91 = vld [vmem:[#allocation5 + $0x20] sm:$0xff]
    %v92 = vld [vmem:[#allocation5 + $0x28] sm:$0xff]
    %v93 = vld [vmem:[#allocation5 + $0x30] sm:$0xff]
    %v94 = vld [vmem:[#allocation5 + $0x38] sm:$0xff]
    %v95 = vld [vmem:[#allocation5 + $0x40] sm:$0xff]
    %v96 = vld [vmem:[#allocation5 + $0x48] sm:$0xff]
    %v97 = vld [vmem:[#allocation5 + $0x50] sm:$0xff]
    %v98 = vld [vmem:[#allocation5 + $0x58] sm:$0xff]
    %v99 = vld [vmem:[#allocation5 + $0x60] sm:$0xff]
    %v100 = vld [vmem:[#allocation5 + $0x68] sm:$0xff]
    %v101 = vld [vmem:[#allocation5 + $0x70] sm:$0xff]
    %v102 = vld [vmem:[#allocation5 + $0x78] sm:$0xff]
    %v103 = vld [vmem:[#allocation5 + $0x80] sm:$0xff]
    %v104 = vld [vmem:[#allocation5 + $0x88] sm:$0xff]
    %v105 = vld [vmem:[#allocation5 + $0x90] sm:$0xff]
    %v106 = vld [vmem:[#allocation5 + $0x98] sm:$0xff]
    %v107 = vld [vmem:[#allocation5 + $0xa0] sm:$0xff]
    %v108 = vld [vmem:[#allocation5 + $0xa8] sm:$0xff]
    %v109 = vld [vmem:[#allocation5 + $0xb0] sm:$0xff]
    %v110 = vld [vmem:[#allocation5 + $0xb8] sm:$0xff]
    %v111 = vld [vmem:[#allocation5 + $0xc0] sm:$0xff]
    %v112 = vld [vmem:[#allocation5 + $0xc8] sm:$0xff]
    %v113 = vld [vmem:[#allocation5 + $0xd0] sm:$0xff]
    %v114 = vld [vmem:[#allocation5 + $0xd8] sm:$0xff]
    %v115 = vld [vmem:[#allocation5 + $0xe0] sm:$0xff]
    %v116 = vld [vmem:[#allocation5 + $0xe8] sm:$0xff]
    %v117 = vld [vmem:[#allocation5 + $0xf0] sm:$0xff]
    %v118 = vld [vmem:[#allocation5 + $0xf8] sm:$0xff]
    %v119 = vld [vmem:[#allocation7] sm:$0x3]
    %v121 = vlaneseq
    %v122 = vshrl.u32 %v121, 7
    %v123 = vsub.s32 0, %v122
    %v124 = vrot.slane %v119, %v123
    %v125 = vlaneseq
    %v126 = vshrl.u32 %v125, 7
    %v127 = vsub.s32 1, %v126
    %v128 = vrot.slane %v119, %v127
    %131 = vmatprep.subr.mxu0 %v88
    %132 = vmatpush1.msra.mxu0 %v87
    %133 = vmatprep.subr.mxu0 %v90
    %134 = vmatpush1.msra.mxu0 %v89
    %135 = vmatprep.subr.mxu0 %v92
    %136 = vmatpush1.msra.mxu0 %v91
    %137 = vmatprep.subr.mxu0 %v94
    %138 = vmatpush1.msra.mxu0 %v93
    %139 = vmatprep.subr.mxu0 %v96
    %140 = vmatpush1.msra.mxu0 %v95
    %141 = vmatprep.subr.mxu0 %v98
    %142 = vmatpush1.msra.mxu0 %v97
    %143 = vmatprep.subr.mxu0 %v100
    %144 = vmatpush1.msra.mxu0 %v99
    %145 = vmatprep.subr.mxu0 %v102
    %146 = vmatpush1.msra.mxu0 %v101
    %147 = vmatprep.subr.mxu0 %v104
    %148 = vmatpush1.msra.mxu0 %v103
    %149 = vmatprep.subr.mxu0 %v106
    %150 = vmatpush1.msra.mxu0 %v105
    %151 = vmatprep.subr.mxu0 %v108
    %152 = vmatpush1.msra.mxu0 %v107
    %153 = vmatprep.subr.mxu0 %v110
    %154 = vmatpush1.msra.mxu0 %v109
    %155 = vmatprep.subr.mxu0 %v112
    %156 = vmatpush1.msra.mxu0 %v111
    %157 = vmatprep.subr.mxu0 %v114
    %158 = vmatpush1.msra.mxu0 %v113
    %159 = vmatprep.subr.mxu0 %v116
    %160 = vmatpush1.msra.mxu0 %v115
    %161 = vmatprep.subr.mxu0 %v118
    %162 = vmatpush1.msra.mxu0 %v117
    %163 = vmatprep.subr.mxu0 0.0
    %164 = vmatpush1.msra.mxu0 0.0
    %165 = vmatprep.subr.mxu0 0.0
    %166 = vmatpush1.msra.mxu0 0.0
    %167 = vmatprep.subr.mxu0 0.0
    %168 = vmatpush1.msra.mxu0 0.0
    %169 = vmatprep.subr.mxu0 0.0
    %170 = vmatpush1.msra.mxu0 0.0
    %171 = vmatprep.subr.mxu0 0.0
    %172 = vmatpush1.msra.mxu0 0.0
    %173 = vmatprep.subr.mxu0 0.0
    %174 = vmatpush1.msra.mxu0 0.0
    %175 = vmatprep.subr.mxu0 0.0
    %176 = vmatpush1.msra.mxu0 0.0
    %177 = vmatprep.subr.mxu0 0.0
    %178 = vmatpush1.msra.mxu0 0.0
    %179 = vmatprep.subr.mxu0 0.0
    %180 = vmatpush1.msra.mxu0 0.0
    %181 = vmatprep.subr.mxu0 0.0
    %182 = vmatpush1.msra.mxu0 0.0
    %183 = vmatprep.subr.mxu0 0.0
    %184 = vmatpush1.msra.mxu0 0.0
    %185 = vmatprep.subr.mxu0 0.0
    %186 = vmatpush1.msra.mxu0 0.0
    %187 = vmatprep.subr.mxu0 0.0
    %188 = vmatpush1.msra.mxu0 0.0
    %189 = vmatprep.subr.mxu0 0.0
    %190 = vmatpush1.msra.mxu0 0.0
    %191 = vmatprep.subr.mxu0 0.0
    %192 = vmatpush1.msra.mxu0 0.0
    %193 = vmatprep.subr.mxu0 0.0
    %194 = vmatpush1.msra.mxu0 0.0
    %195 = vmatprep.mubr.f32.mxu0 0.0
    %196 = vmatmul.mubr.f32.gmra.mrb[0].mxu0 %v85
    %v197 = vpop.f32.mrb[0].mxu0
    %v198 = vadd.f32 %v124, %v197
    %v199 = vpop.f32.mrb[0].mxu0
    %v200 = vadd.f32 %v128, %v199
    %201 = vmatprep.mubr.f32.mxu0 0.0
    %202 = vmatmul.mubr.f32.gmra.mrb[0].mxu0 %v86
    %v203 = vpop.f32.mrb[0].mxu0
    %v204 = vadd.f32 %v124, %v203
    %v205 = vpop.f32.mrb[0].mxu0
    %v206 = vadd.f32 %v128, %v205
    %207 = vdwg.mxu0
    %v208 = vxor.u32 %v198, 2147483648
    %v209 = vxor.u32 %v204, 2147483648
    %v210 = vmul.f32 %v208, 1.442695
    %v211 = vpow.pop %v210
    %v212 = vmul.f32 %v209, 1.442695
    %v213 = vpow.pop %v212
    %v214 = vadd.f32 %v211, 1.0
    %v215 = vadd.f32 %v213, 1.0
    %v216 = vrcp.pop %v214
    %v217 = vmul.f32 1.0, %v216
    %v218 = vrcp.pop %v215
    %v219 = vmul.f32 1.0, %v218
    %v220 = vmul.f32 %v198, %v217
    %v221 = vmul.f32 %v204, %v219
    %v222 = vmul.f32 %v220, %v200
    %v223 = vmul.f32 %v221, %v206
    %v224 = vld [vmem:[#allocation8] sm:$0xff]
    %v225 = vld [vmem:[#allocation8 + $0x8] sm:$0xff]
    %v226 = vld [vmem:[#allocation8 + $0x10] sm:$0xff]
    %v227 = vld [vmem:[#allocation8 + $0x18] sm:$0xff]
    %v228 = vld [vmem:[#allocation8 + $0x20] sm:$0xff]
    %v229 = vld [vmem:[#allocation8 + $0x28] sm:$0xff]
    %v230 = vld [vmem:[#allocation8 + $0x30] sm:$0xff]
    %v231 = vld [vmem:[#allocation8 + $0x38] sm:$0xff]
    %v232 = vld [vmem:[#allocation8 + $0x40] sm:$0xff]
    %v233 = vld [vmem:[#allocation8 + $0x48] sm:$0xff]
    %v234 = vld [vmem:[#allocation8 + $0x50] sm:$0xff]
    %v235 = vld [vmem:[#allocation8 + $0x58] sm:$0xff]
    %v236 = vld [vmem:[#allocation8 + $0x60] sm:$0xff]
    %v237 = vld [vmem:[#allocation8 + $0x68] sm:$0xff]
    %v238 = vld [vmem:[#allocation8 + $0x70] sm:$0xff]
    %v239 = vld [vmem:[#allocation8 + $0x78] sm:$0xff]
    %240 = vmatprep.subr.mxu0 0.0
    %241 = vmatpush1.msra.mxu0 %v224
    %242 = vmatprep.subr.mxu0 0.0
    %243 = vmatpush1.msra.mxu0 %v225
    %244 = vmatprep.subr.mxu0 0.0
    %245 = vmatpush1.msra.mxu0 %v226
    %246 = vmatprep.subr.mxu0 0.0
    %247 = vmatpush1.msra.mxu0 %v227
    %248 = vmatprep.subr.mxu0 0.0
    %249 = vmatpush1.msra.mxu0 %v228
    %250 = vmatprep.subr.mxu0 0.0
    %251 = vmatpush1.msra.mxu0 %v229
    %252 = vmatprep.subr.mxu0 0.0
    %253 = vmatpush1.msra.mxu0 %v230
    %254 = vmatprep.subr.mxu0 0.0
    %255 = vmatpush1.msra.mxu0 %v231
    %256 = vmatprep.subr.mxu0 0.0
    %257 = vmatpush1.msra.mxu0 %v232
    %258 = vmatprep.subr.mxu0 0.0
    %259 = vmatpush1.msra.mxu0 %v233
    %260 = vmatprep.subr.mxu0 0.0
    %261 = vmatpush1.msra.mxu0 %v234
    %262 = vmatprep.subr.mxu0 0.0
    %263 = vmatpush1.msra.mxu0 %v235
    %264 = vmatprep.subr.mxu0 0.0
    %265 = vmatpush1.msra.mxu0 %v236
    %266 = vmatprep.subr.mxu0 0.0
    %267 = vmatpush1.msra.mxu0 %v237
    %268 = vmatprep.subr.mxu0 0.0
    %269 = vmatpush1.msra.mxu0 %v238
    %270 = vmatprep.subr.mxu0 0.0
    %271 = vmatpush1.msra.mxu0 %v239
    %272 = vmatprep.subr.mxu0 0.0
    %273 = vmatpush1.msra.mxu0 0.0
    %274 = vmatprep.subr.mxu0 0.0
    %275 = vmatpush1.msra.mxu0 0.0
    %276 = vmatprep.subr.mxu0 0.0
    %277 = vmatpush1.msra.mxu0 0.0
    %278 = vmatprep.subr.mxu0 0.0
    %279 = vmatpush1.msra.mxu0 0.0
    %280 = vmatprep.subr.mxu0 0.0
    %281 = vmatpush1.msra.mxu0 0.0
    %282 = vmatprep.subr.mxu0 0.0
    %283 = vmatpush1.msra.mxu0 0.0
    %284 = vmatprep.subr.mxu0 0.0
    %285 = vmatpush1.msra.mxu0 0.0
    %286 = vmatprep.subr.mxu0 0.0
    %287 = vmatpush1.msra.mxu0 0.0
    %288 = vmatprep.subr.mxu0 0.0
    %289 = vmatpush1.msra.mxu0 0.0
    %290 = vmatprep.subr.mxu0 0.0
    %291 = vmatpush1.msra.mxu0 0.0
    %292 = vmatprep.subr.mxu0 0.0
    %293 = vmatpush1.msra.mxu0 0.0
    %294 = vmatprep.subr.mxu0 0.0
    %295 = vmatpush1.msra.mxu0 0.0
    %296 = vmatprep.subr.mxu0 0.0
    %297 = vmatpush1.msra.mxu0 0.0
    %298 = vmatprep.subr.mxu0 0.0
    %299 = vmatpush1.msra.mxu0 0.0
    %300 = vmatprep.subr.mxu0 0.0
    %301 = vmatpush1.msra.mxu0 0.0
    %302 = vmatprep.subr.mxu0 0.0
    %303 = vmatpush1.msra.mxu0 0.0
    %304 = vmatprep.mubr.f32.mxu0 0.0
    %305 = vmatmul.mubr.f32.gmra.mrb[0].mxu0 %v222
    %v306 = vpop.f32.mrb[0].mxu0
    %v307 = vadd.f32 0.0, %v306
    %v308 = vpop.f32.mrb[0].mxu0
    %309 = vmatprep.mubr.f32.mxu0 0.0
    %310 = vmatmul.mubr.f32.gmra.mrb[0].mxu0 %v223
    %v311 = vpop.f32.mrb[0].mxu0
    %v312 = vadd.f32 0.0, %v311
    %v313 = vpop.f32.mrb[0].mxu0
    %314 = vdwg.mxu0
    %p315 = scmp.eq.s32.totalorder 0, 0
    // Predicated region
    $region42: #{tpu_custom_call.1} parent=1 // pred_check
      %p316 = pneg %p315
    $region43: #{tpu_custom_call.1} parent=1 // pred_check_branch
      %318 = sbr.rel (%p316) target = $region45
    $region44: #{tpu_custom_call.1} parent=1 // pred_region
      %v319 = vld [vmem:[#allocation10] sm:$0x1]
      %v321 = vlaneseq
      %v322 = vshrl.u32 %v321, 7
      %v323 = vsub.s32 0, %v322
      %v324 = vrot.slane %v319, %v323
      %v326 = vadd.f32 %v307, %v324
      %v327 = vadd.f32 %v312, %v324
      %328 = vst [vmem:[#allocation11] sm:$0xff] %v326
      %329 = vst [vmem:[#allocation11 + $0x8] sm:$0xff] %v327
    $region45: #{tpu_custom_call.1} parent=1 // pred_fallthru
      _
    %p330 = scmp.ne.s32.totalorder 0, 0
    // Predicated region
    $region46: #{tpu_custom_call.1} parent=1 // pred_check
      %p331 = pneg %p330
    $region47: #{tpu_custom_call.1} parent=1 // pred_check_branch
      %333 = sbr.rel (%p331) target = $region49
    $region48: #{tpu_custom_call.1} parent=1 // pred_region
      %v334 = vld [vmem:[#allocation11] sm:$0xff]
      %v335 = vld [vmem:[#allocation11 + $0x8] sm:$0xff]
      %v336 = vadd.f32 %v334, %v307
      %v337 = vadd.f32 %v335, %v312
      %338 = vst [vmem:[#allocation11] sm:$0xff] %v336
      %339 = vst [vmem:[#allocation11 + $0x8] sm:$0xff] %v337
    $region49: #{tpu_custom_call.1} parent=1 // pred_fallthru
      _
    // Predicated region
    $region50: #{tpu_custom_call.1} parent=1 // pred_check
      _
    $region51: #{tpu_custom_call.1} parent=1 // pred_check_branch
      %341 = sbr.rel (0) target = $region53
    $region52: #{tpu_custom_call.1} parent=1 // pred_region
      %s343 = ssub.s32 256, 256
      %344 = vsyncadd [#allocation4], %s343
      %s345 = sshll.u32 [#allocation11], 4
      %s346 = int_to_ptr.vmem [resolvable:$true] %s345
      %351 = dma.vmem_to_hbm [thread:$0]  %s346, 256, %s5, [#allocation4], 128, 128, 8
    $region53: #{tpu_custom_call.1} parent=1 // pred_fallthru
      _
    // Predicated region
    $region54: #{tpu_custom_call.1} parent=1 // pred_check
      _
    $region55: #{tpu_custom_call.1} parent=1 // pred_check_branch
      %353 = sbr.rel (0) target = $region57
    $region56: #{tpu_custom_call.1} parent=1 // pred_region
      %354 = dma.done [#allocation4], 256
    $region57: #{tpu_custom_call.1} parent=1 // pred_fallthru
      _
    %355 = vsyncpa [#allocation3], 1
    %356 = vsyncpa [#allocation6], 1
    %357 = vsyncpa [#allocation9], 1
    %358 = vsyncpa [#allocation4], 1

// kernel: tpu_custom_call.1
$region0: #{tpu_custom_call.1}
  #allocation0 [shape = 'u32[]', space=smem, size = 0x4, offset = 0x4, fixed_abs, tag = 'smem constant byte address 0x4 - core index']
  #allocation1 [shape = 'u32[144,128]{1,0:T(1,128)}', space=vmem, size = 0x12000, scoped, tag = 'internal scratch']
  %s0 = inlined_call_operand.hbm [shape: f32[16,128], index: 0, kind: input, shape index: {}]
  %s1 = inlined_call_operand.hbm [shape: f32[128,256], index: 1, kind: input, shape index: {}]
  %s2 = inlined_call_operand.hbm [shape: f32[1,256], index: 2, kind: input, shape index: {}]
  %s3 = inlined_call_operand.hbm [shape: f32[128,128], index: 3, kind: input, shape index: {}]
  %s4 = inlined_call_operand.hbm [shape: f32[1,128], index: 4, kind: input, shape index: {}]
  %s5 = inlined_call_operand.hbm [shape: f32[16,128], index: 5, kind: output, shape index: {}]
  %s6 = sld [smem:[#allocation0]]
  $region58: #{tpu_custom_call.1} parent=0
    _
  %s8 = ssub.s32 1, %s6
  %s9 = scalar_select 0, %s8, %s6
  $region1: #{tpu_custom_call.1} parent=0
    #allocation2 [shape = 'u8[8192]{0}', space=vmem, size = 0x2000, scoped, tag = 'input window, operand 0, single buffered']
    #allocation3 [shape = 's32[1]{0}', space=sflag, size = 0x4, scoped, tag = 'scoped memory for tpu_custom_call.1']
    #allocation4 [shape = 's32[1]{0}', space=sflag, size = 0x4, scoped, tag = 'scoped memory for tpu_custom_call.1']
    #allocation5 [shape = 'u8[131072]{0}', space=vmem, size = 0x20000, scoped, tag = 'input window, operand 1, single buffered']
    #allocation6 [shape = 's32[1]{0}', space=sflag, size = 0x4, scoped, tag = 'scoped memory for tpu_custom_call.1']
    #allocation7 [shape = 'u8[1024]{0}', space=vmem, size = 0x400, scoped, tag = 'input window, operand 2, single buffered']
    #allocation8 [shape = 'u8[65536]{0}', space=vmem, size = 0x10000, scoped, tag = 'input window, operand 3, single buffered']
    #allocation9 [shape = 's32[1]{0}', space=sflag, size = 0x4, scoped, tag = 'scoped memory for tpu_custom_call.1']
    #allocation10 [shape = 'u8[512]{0}', space=vmem, size = 0x400, scoped, tag = 'input window, operand 4, single buffered']
    #allocation11 [shape = 'u8[8192]{0}', space=vmem, size = 0x2000, scoped, tag = 'output window, operand 0, single buffered']
    %10 = vsyncpa [#allocation3], 0
    %11 = vsyncpa [#allocation6], 0
    %12 = vsyncpa [#allocation9], 0
    %13 = vsyncpa [#allocation4], 0
    // Predicated region
    $region2: #{tpu_custom_call.1} parent=1 // pred_check
      _
    $region3: #{tpu_custom_call.1} parent=1 // pred_check_branch
      %15 = sbr.rel (0) target = $region5
    $region4: #{tpu_custom_call.1} parent=1 // pred_region
      %s17 = ssub.s32 256, 256
      %18 = vsyncadd [#allocation3], %s17
      %s19 = sshll.u32 [#allocation2], 4
      %s20 = int_to_ptr.vmem [resolvable:$true] %s19
      %25 = dma.hbm_to_vmem [thread:$0]  %s0, 256, %s20, [#allocation3], 128, 128, 8
    $region5: #{tpu_custom_call.1} parent=1 // pred_fallthru
      _
    // Predicated region
    $region6: #{tpu_custom_call.1} parent=1 // pred_check
      _
    $region7: #{tpu_custom_call.1} parent=1 // pred_check_branch
      %27 = sbr.rel (0) target = $region9
    $region8: #{tpu_custom_call.1} parent=1 // pred_region
      %s29 = ssub.s32 4096, 4096
      %30 = vsyncadd [#allocation6], %s29
      %s31 = sshll.u32 [#allocation5], 4
      %s32 = int_to_ptr.vmem [resolvable:$true] %s31
      %37 = dma.hbm_to_vmem [thread:$0]  %s1, 4096, %s32, [#allocation6], 256, 256, 16
    $region9: #{tpu_custom_call.1} parent=1 // pred_fallthru
      _
    // Predicated region
    $region10: #{tpu_custom_call.1} parent=1 // pred_check
      _
    $region11: #{tpu_custom_call.1} parent=1 // pred_check_branch
      %39 = sbr.rel (0) target = $region13
    $region12: #{tpu_custom_call.1} parent=1 // pred_region
      %s41 = ssub.s32 32, 32
      %42 = vsyncadd [#allocation6], %s41
      %s44 = sshll.u32 [#allocation7], 4
      %s45 = int_to_ptr.vmem [resolvable:$true] %s44
      %47 = dma.hbm_to_vmem [thread:$0]  %s2, 32, %s45, [#allocation6]
    $region13: #{tpu_custom_call.1} parent=1 // pred_fallthru
      _
    // Predicated region
    $region14: #{tpu_custom_call.1} parent=1 // pred_check
      _
    $region15: #{tpu_custom_call.1} parent=1 // pred_check_branch
      %49 = sbr.rel (0) target = $region17
    $region16: #{tpu_custom_call.1} parent=1 // pred_region
      %s51 = ssub.s32 2048, 2048
      %52 = vsyncadd [#allocation9], %s51
      %s53 = sshll.u32 [#allocation8], 4
      %s54 = int_to_ptr.vmem [resolvable:$true] %s53
      %59 = dma.hbm_to_vmem [thread:$0]  %s3, 2048, %s54, [#allocation9], 128, 128, 8
    $region17: #{tpu_custom_call.1} parent=1 // pred_fallthru
      _
    // Predicated region
    $region18: #{tpu_custom_call.1} parent=1 // pred_check
      _
    $region19: #{tpu_custom_call.1} parent=1 // pred_check_branch
      %61 = sbr.rel (0) target = $region21
    $region20: #{tpu_custom_call.1} parent=1 // pred_region
      %s63 = ssub.s32 16, 16
      %64 = vsyncadd [#allocation9], %s63
      %s66 = sshll.u32 [#allocation10], 4
      %s67 = int_to_ptr.vmem [resolvable:$true] %s66
      %69 = dma.hbm_to_vmem [thread:$0]  %s4, 16, %s67, [#allocation9]
    $region21: #{tpu_custom_call.1} parent=1 // pred_fallthru
      _
    // Predicated region
    $region22: #{tpu_custom_call.1} parent=1 // pred_check
      _
    $region23: #{tpu_custom_call.1} parent=1 // pred_check_branch
      %71 = sbr.rel (0) target = $region25
    $region24: #{tpu_custom_call.1} parent=1 // pred_region
      %72 = dma.done [#allocation3], 256
    $region25: #{tpu_custom_call.1} parent=1 // pred_fallthru
      _
    // Predicated region
    $region26: #{tpu_custom_call.1} parent=1 // pred_check
      _
    $region27: #{tpu_custom_call.1} parent=1 // pred_check_branch
      %74 = sbr.rel (0) target = $region29
    $region28: #{tpu_custom_call.1} parent=1 // pred_region
      %75 = dma.done [#allocation6], 4096
    $region29: #{tpu_custom_call.1} parent=1 // pred_fallthru
      _
    // Predicated region
    $region30: #{tpu_custom_call.1} parent=1 // pred_check
      _
    $region31: #{tpu_custom_call.1} parent=1 // pred_check_branch
      %77 = sbr.rel (0) target = $region33
    $region32: #{tpu_custom_call.1} parent=1 // pred_region
      %78 = dma.done [#allocation6], 32
    $region33: #{tpu_custom_call.1} parent=1 // pred_fallthru
      _
    // Predicated region
    $region34: #{tpu_custom_call.1} parent=1 // pred_check
      _
    $region35: #{tpu_custom_call.1} parent=1 // pred_check_branch
      %80 = sbr.rel (0) target = $region37
    $region36: #{tpu_custom_call.1} parent=1 // pred_region
      %81 = dma.done [#allocation9], 2048
    $region37: #{tpu_custom_call.1} parent=1 // pred_fallthru
      _
    // Predicated region
    $region38: #{tpu_custom_call.1} parent=1 // pred_check
      _
    $region39: #{tpu_custom_call.1} parent=1 // pred_check_branch
      %83 = sbr.rel (0) target = $region41
    $region40: #{tpu_custom_call.1} parent=1 // pred_region
      %84 = dma.done [#allocation9], 16
    $region41: #{tpu_custom_call.1} parent=1 // pred_fallthru
      _
    %v85 = vld [vmem:[#allocation2] sm:$0xff]
    %v86 = vld [vmem:[#allocation2 + $0x8] sm:$0xff]
    %v87 = vld [vmem:[#allocation5] sm:$0xff]
    %v88 = vld [vmem:[#allocation5 + $0x8] sm:$0xff]
    %v89 = vld [vmem:[#allocation5 + $0x10] sm:$0xff]
    %v90 = vld [vmem:[#allocation5 + $0x18] sm:$0xff]
    %v91 = vld [vmem:[#allocation5 + $0x20] sm:$0xff]
    %v92 = vld [vmem:[#allocation5 + $0x28] sm:$0xff]
    %v93 = vld [vmem:[#allocation5 + $0x30] sm:$0xff]
    %v94 = vld [vmem:[#allocation5 + $0x38] sm:$0xff]
    %v95 = vld [vmem:[#allocation5 + $0x40] sm:$0xff]
    %v96 = vld [vmem:[#allocation5 + $0x48] sm:$0xff]
    %v97 = vld [vmem:[#allocation5 + $0x50] sm:$0xff]
    %v98 = vld [vmem:[#allocation5 + $0x58] sm:$0xff]
    %v99 = vld [vmem:[#allocation5 + $0x60] sm:$0xff]
    %v100 = vld [vmem:[#allocation5 + $0x68] sm:$0xff]
    %v101 = vld [vmem:[#allocation5 + $0x70] sm:$0xff]
    %v102 = vld [vmem:[#allocation5 + $0x78] sm:$0xff]
    %v103 = vld [vmem:[#allocation5 + $0x80] sm:$0xff]
    %v104 = vld [vmem:[#allocation5 + $0x88] sm:$0xff]
    %v105 = vld [vmem:[#allocation5 + $0x90] sm:$0xff]
    %v106 = vld [vmem:[#allocation5 + $0x98] sm:$0xff]
    %v107 = vld [vmem:[#allocation5 + $0xa0] sm:$0xff]
    %v108 = vld [vmem:[#allocation5 + $0xa8] sm:$0xff]
    %v109 = vld [vmem:[#allocation5 + $0xb0] sm:$0xff]
    %v110 = vld [vmem:[#allocation5 + $0xb8] sm:$0xff]
    %v111 = vld [vmem:[#allocation5 + $0xc0] sm:$0xff]
    %v112 = vld [vmem:[#allocation5 + $0xc8] sm:$0xff]
    %v113 = vld [vmem:[#allocation5 + $0xd0] sm:$0xff]
    %v114 = vld [vmem:[#allocation5 + $0xd8] sm:$0xff]
    %v115 = vld [vmem:[#allocation5 + $0xe0] sm:$0xff]
    %v116 = vld [vmem:[#allocation5 + $0xe8] sm:$0xff]
    %v117 = vld [vmem:[#allocation5 + $0xf0] sm:$0xff]
    %v118 = vld [vmem:[#allocation5 + $0xf8] sm:$0xff]
    %v119 = vld [vmem:[#allocation7] sm:$0x3]
    %v121 = vlaneseq
    %v122 = vshrl.u32 %v121, 7
    %v123 = vsub.s32 0, %v122
    %v124 = vrot.slane %v119, %v123
    %v125 = vlaneseq
    %v126 = vshrl.u32 %v125, 7
    %v127 = vsub.s32 1, %v126
    %v128 = vrot.slane %v119, %v127
    %131 = vmatprep.subr.mxu0 %v88
    %132 = vmatpush1.msra.mxu0 %v87
    %133 = vmatprep.subr.mxu0 %v90
    %134 = vmatpush1.msra.mxu0 %v89
    %135 = vmatprep.subr.mxu0 %v92
    %136 = vmatpush1.msra.mxu0 %v91
    %137 = vmatprep.subr.mxu0 %v94
    %138 = vmatpush1.msra.mxu0 %v93
    %139 = vmatprep.subr.mxu0 %v96
    %140 = vmatpush1.msra.mxu0 %v95
    %141 = vmatprep.subr.mxu0 %v98
    %142 = vmatpush1.msra.mxu0 %v97
    %143 = vmatprep.subr.mxu0 %v100
    %144 = vmatpush1.msra.mxu0 %v99
    %145 = vmatprep.subr.mxu0 %v102
    %146 = vmatpush1.msra.mxu0 %v101
    %147 = vmatprep.subr.mxu0 %v104
    %148 = vmatpush1.msra.mxu0 %v103
    %149 = vmatprep.subr.mxu0 %v106
    %150 = vmatpush1.msra.mxu0 %v105
    %151 = vmatprep.subr.mxu0 %v108
    %152 = vmatpush1.msra.mxu0 %v107
    %153 = vmatprep.subr.mxu0 %v110
    %154 = vmatpush1.msra.mxu0 %v109
    %155 = vmatprep.subr.mxu0 %v112
    %156 = vmatpush1.msra.mxu0 %v111
    %157 = vmatprep.subr.mxu0 %v114
    %158 = vmatpush1.msra.mxu0 %v113
    %159 = vmatprep.subr.mxu0 %v116
    %160 = vmatpush1.msra.mxu0 %v115
    %161 = vmatprep.subr.mxu0 %v118
    %162 = vmatpush1.msra.mxu0 %v117
    %163 = vmatprep.subr.mxu0 0.0
    %164 = vmatpush1.msra.mxu0 0.0
    %165 = vmatprep.subr.mxu0 0.0
    %166 = vmatpush1.msra.mxu0 0.0
    %167 = vmatprep.subr.mxu0 0.0
    %168 = vmatpush1.msra.mxu0 0.0
    %169 = vmatprep.subr.mxu0 0.0
    %170 = vmatpush1.msra.mxu0 0.0
    %171 = vmatprep.subr.mxu0 0.0
    %172 = vmatpush1.msra.mxu0 0.0
    %173 = vmatprep.subr.mxu0 0.0
    %174 = vmatpush1.msra.mxu0 0.0
    %175 = vmatprep.subr.mxu0 0.0
    %176 = vmatpush1.msra.mxu0 0.0
    %177 = vmatprep.subr.mxu0 0.0
    %178 = vmatpush1.msra.mxu0 0.0
    %179 = vmatprep.subr.mxu0 0.0
    %180 = vmatpush1.msra.mxu0 0.0
    %181 = vmatprep.subr.mxu0 0.0
    %182 = vmatpush1.msra.mxu0 0.0
    %183 = vmatprep.subr.mxu0 0.0
    %184 = vmatpush1.msra.mxu0 0.0
    %185 = vmatprep.subr.mxu0 0.0
    %186 = vmatpush1.msra.mxu0 0.0
    %187 = vmatprep.subr.mxu0 0.0
    %188 = vmatpush1.msra.mxu0 0.0
    %189 = vmatprep.subr.mxu0 0.0
    %190 = vmatpush1.msra.mxu0 0.0
    %191 = vmatprep.subr.mxu0 0.0
    %192 = vmatpush1.msra.mxu0 0.0
    %193 = vmatprep.subr.mxu0 0.0
    %194 = vmatpush1.msra.mxu0 0.0
    %195 = vmatprep.mubr.f32.mxu0 0.0
    %196 = vmatmul.mubr.f32.gmra.mrb[0].mxu0 %v85
    %v197 = vpop.f32.mrb[0].mxu0
    %v198 = vadd.f32 %v124, %v197
    %v199 = vpop.f32.mrb[0].mxu0
    %v200 = vadd.f32 %v128, %v199
    %201 = vmatprep.mubr.f32.mxu0 0.0
    %202 = vmatmul.mubr.f32.gmra.mrb[0].mxu0 %v86
    %v203 = vpop.f32.mrb[0].mxu0
    %v204 = vadd.f32 %v124, %v203
    %v205 = vpop.f32.mrb[0].mxu0
    %v206 = vadd.f32 %v128, %v205
    %207 = vdwg.mxu0
    %v208 = vxor.u32 %v198, 2147483648
    %v209 = vxor.u32 %v204, 2147483648
    %v210 = vmul.f32 %v208, 1.442695
    %v211 = vpow.pop %v210
    %v212 = vmul.f32 %v209, 1.442695
    %v213 = vpow.pop %v212
    %v214 = vadd.f32 %v211, 1.0
    %v215 = vadd.f32 %v213, 1.0
    %v216 = vrcp.pop %v214
    %v217 = vmul.f32 1.0, %v216
    %v218 = vrcp.pop %v215
    %v219 = vmul.f32 1.0, %v218
    %v220 = vmul.f32 %v198, %v217
    %v221 = vmul.f32 %v204, %v219
    %v222 = vmul.f32 %v220, %v200
    %v223 = vmul.f32 %v221, %v206
    %v224 = vld [vmem:[#allocation8] sm:$0xff]
    %v225 = vld [vmem:[#allocation8 + $0x8] sm:$0xff]
    %v226 = vld [vmem:[#allocation8 + $0x10] sm:$0xff]
    %v227 = vld [vmem:[#allocation8 + $0x18] sm:$0xff]
    %v228 = vld [vmem:[#allocation8 + $0x20] sm:$0xff]
    %v229 = vld [vmem:[#allocation8 + $0x28] sm:$0xff]
    %v230 = vld [vmem:[#allocation8 + $0x30] sm:$0xff]
    %v231 = vld [vmem:[#allocation8 + $0x38] sm:$0xff]
    %v232 = vld [vmem:[#allocation8 + $0x40] sm:$0xff]
    %v233 = vld [vmem:[#allocation8 + $0x48] sm:$0xff]
    %v234 = vld [vmem:[#allocation8 + $0x50] sm:$0xff]
    %v235 = vld [vmem:[#allocation8 + $0x58] sm:$0xff]
    %v236 = vld [vmem:[#allocation8 + $0x60] sm:$0xff]
    %v237 = vld [vmem:[#allocation8 + $0x68] sm:$0xff]
    %v238 = vld [vmem:[#allocation8 + $0x70] sm:$0xff]
    %v239 = vld [vmem:[#allocation8 + $0x78] sm:$0xff]
    %240 = vmatprep.subr.mxu0 0.0
    %241 = vmatpush1.msra.mxu0 %v224
    %242 = vmatprep.subr.mxu0 0.0
    %243 = vmatpush1.msra.mxu0 %v225
    %244 = vmatprep.subr.mxu0 0.0
    %245 = vmatpush1.msra.mxu0 %v226
    %246 = vmatprep.subr.mxu0 0.0
    %247 = vmatpush1.msra.mxu0 %v227
    %248 = vmatprep.subr.mxu0 0.0
    %249 = vmatpush1.msra.mxu0 %v228
    %250 = vmatprep.subr.mxu0 0.0
    %251 = vmatpush1.msra.mxu0 %v229
    %252 = vmatprep.subr.mxu0 0.0
    %253 = vmatpush1.msra.mxu0 %v230
    %254 = vmatprep.subr.mxu0 0.0
    %255 = vmatpush1.msra.mxu0 %v231
    %256 = vmatprep.subr.mxu0 0.0
    %257 = vmatpush1.msra.mxu0 %v232
    %258 = vmatprep.subr.mxu0 0.0
    %259 = vmatpush1.msra.mxu0 %v233
    %260 = vmatprep.subr.mxu0 0.0
    %261 = vmatpush1.msra.mxu0 %v234
    %262 = vmatprep.subr.mxu0 0.0
    %263 = vmatpush1.msra.mxu0 %v235
    %264 = vmatprep.subr.mxu0 0.0
    %265 = vmatpush1.msra.mxu0 %v236
    %266 = vmatprep.subr.mxu0 0.0
    %267 = vmatpush1.msra.mxu0 %v237
    %268 = vmatprep.subr.mxu0 0.0
    %269 = vmatpush1.msra.mxu0 %v238
    %270 = vmatprep.subr.mxu0 0.0
    %271 = vmatpush1.msra.mxu0 %v239
    %272 = vmatprep.subr.mxu0 0.0
    %273 = vmatpush1.msra.mxu0 0.0
    %274 = vmatprep.subr.mxu0 0.0
    %275 = vmatpush1.msra.mxu0 0.0
    %276 = vmatprep.subr.mxu0 0.0
    %277 = vmatpush1.msra.mxu0 0.0
    %278 = vmatprep.subr.mxu0 0.0
    %279 = vmatpush1.msra.mxu0 0.0
    %280 = vmatprep.subr.mxu0 0.0
    %281 = vmatpush1.msra.mxu0 0.0
    %282 = vmatprep.subr.mxu0 0.0
    %283 = vmatpush1.msra.mxu0 0.0
    %284 = vmatprep.subr.mxu0 0.0
    %285 = vmatpush1.msra.mxu0 0.0
    %286 = vmatprep.subr.mxu0 0.0
    %287 = vmatpush1.msra.mxu0 0.0
    %288 = vmatprep.subr.mxu0 0.0
    %289 = vmatpush1.msra.mxu0 0.0
    %290 = vmatprep.subr.mxu0 0.0
    %291 = vmatpush1.msra.mxu0 0.0
    %292 = vmatprep.subr.mxu0 0.0
    %293 = vmatpush1.msra.mxu0 0.0
    %294 = vmatprep.subr.mxu0 0.0
    %295 = vmatpush1.msra.mxu0 0.0
    %296 = vmatprep.subr.mxu0 0.0
    %297 = vmatpush1.msra.mxu0 0.0
    %298 = vmatprep.subr.mxu0 0.0
    %299 = vmatpush1.msra.mxu0 0.0
    %300 = vmatprep.subr.mxu0 0.0
    %301 = vmatpush1.msra.mxu0 0.0
    %302 = vmatprep.subr.mxu0 0.0
    %303 = vmatpush1.msra.mxu0 0.0
    %304 = vmatprep.mubr.f32.mxu0 0.0
    %305 = vmatmul.mubr.f32.gmra.mrb[0].mxu0 %v222
    %v306 = vpop.f32.mrb[0].mxu0
    %v307 = vadd.f32 0.0, %v306
    %v308 = vpop.f32.mrb[0].mxu0
    %309 = vmatprep.mubr.f32.mxu0 0.0
    %310 = vmatmul.mubr.f32.gmra.mrb[0].mxu0 %v223
    %v311 = vpop.f32.mrb[0].mxu0
    %v312 = vadd.f32 0.0, %v311
    %v313 = vpop.f32.mrb[0].mxu0
    %314 = vdwg.mxu0
    %p315 = scmp.eq.s32.totalorder 0, 0
    // Predicated region
    $region42: #{tpu_custom_call.1} parent=1 // pred_check
      %p316 = pneg %p315
    $region43: #{tpu_custom_call.1} parent=1 // pred_check_branch
      %318 = sbr.rel (%p316) target = $region45
    $region44: #{tpu_custom_call.1} parent=1 // pred_region
      %v319 = vld [vmem:[#allocation10] sm:$0x1]
      %v321 = vlaneseq
      %v322 = vshrl.u32 %v321, 7
      %v323 = vsub.s32 0, %v322
      %v324 = vrot.slane %v319, %v323
      %v326 = vadd.f32 %v307, %v324
      %v327 = vadd.f32 %v312, %v324
      %328 = vst [vmem:[#allocation11] sm:$0xff] %v326
      %329 = vst [vmem:[#allocation11 + $0x8] sm:$0xff] %v327
    $region45: #{tpu_custom_call.1} parent=1 // pred_fallthru
      _
    %p330 = scmp.ne.s32.totalorder 0, 0
    // Predicated region
    $region46: #{tpu_custom_call.1} parent=1 // pred_check
      %p331 = pneg %p330
    $region47: #{tpu_custom_call.1} parent=1 // pred_check_branch
      %333 = sbr.rel (%p331) target = $region49
    $region48: #{tpu_custom_call.1} parent=1 // pred_region
      %v334 = vld [vmem:[#allocation11] sm:$0xff]
      %v335 = vld [vmem:[#allocation11 + $0x8] sm:$0xff]
      %v336 = vadd.f32 %v334, %v307
      %v337 = vadd.f32 %v335, %v312
      %338 = vst [vmem:[#allocation11] sm:$0xff] %v336
      %339 = vst [vmem:[#allocation11 + $0x8] sm:$0xff] %v337
    $region49: #{tpu_custom_call.1} parent=1 // pred_fallthru
      _
    // Predicated region
    $region50: #{tpu_custom_call.1} parent=1 // pred_check
      _
    $region51: #{tpu_custom_call.1} parent=1 // pred_check_branch
      %341 = sbr.rel (0) target = $region53
    $region52: #{tpu_custom_call.1} parent=1 // pred_region
      %s343 = ssub.s32 256, 256
      %344 = vsyncadd [#allocation4], %s343
      %s345 = sshll.u32 [#allocation11], 4
      %s346 = int_to_ptr.vmem [resolvable:$true] %s345
      %351 = dma.vmem_to_hbm [thread:$0]  %s346, 256, %s5, [#allocation4], 128, 128, 8
    $region53: #{tpu_custom_call.1} parent=1 // pred_fallthru
      _
    // Predicated region
    $region54: #{tpu_custom_call.1} parent=1 // pred_check
      _
    $region55: #{tpu_custom_call.1} parent=1 // pred_check_branch
      %353 = sbr.rel (0) target = $region57
    $region56: #{tpu_custom_call.1} parent=1 // pred_region
      %354 = dma.done [#allocation4], 256
    $region57: #{tpu_custom_call.1} parent=1 // pred_fallthru
      _
    %355 = vsyncpa [#allocation3], 1
    %356 = vsyncpa [#allocation6], 1
    %357 = vsyncpa [#allocation9], 1
    %358 = vsyncpa [#allocation4], 1

</llo_original>
